<compile_context>
chip_gen: v5e
topology: v5e:2x2
jax: 0.10.0
libtpu: 0.0.40
codegen_flags: <defaults>
</compile_context>

<pallas_src>
import functools

import jax
import jax.numpy as jnp
from jax.experimental import pallas as pl
from jax.experimental.pallas import tpu as pltpu


# ----------------------------------------------------------------------------
# Pallas kernel: o[i] (+)= A_tile @ XW[kslice]; finalize with bias (+ masked
# LayerNorm over valid feature lanes) directly on the f32 output block.
# ----------------------------------------------------------------------------
def gcn_agg_kernel(a_ref, xw_ref, b_ref, gamma_ref, beta_ref, o_ref,
                   *, norm, valid_out, tile_k, eps=1e-5):
    k = pl.program_id(1)

    @pl.when(k == 0)
    def _():
        o_ref[...] = jnp.zeros_like(o_ref)

    # XW is fully VMEM-resident; slice the K-chunk for this grid step.
    k_start = pl.multiple_of(k * tile_k, 128)
    xw_tile = xw_ref[pl.ds(k_start, tile_k), :]

    # bf16 x bf16 -> f32 accumulate on the MXU, straight into the resident
    # output block (block index (i, 0) is constant across the K axis).
    o_ref[...] += jnp.dot(a_ref[...], xw_tile,
                          preferred_element_type=jnp.float32)

    @pl.when(k == pl.num_programs(1) - 1)
    def _():
        out = o_ref[...] + b_ref[...]                        # f32 epilogue
        if norm:
            d = float(valid_out)
            # Mask padded lanes out of the LayerNorm statistics.
            mask = jax.lax.broadcasted_iota(jnp.int32, out.shape, 1) < valid_out
            mean = jnp.sum(jnp.where(mask, out, 0.0), axis=-1, keepdims=True) / d
            centered = out - mean
            var = jnp.sum(jnp.where(mask, centered * centered, 0.0),
                          axis=-1, keepdims=True) / d
            out = centered * jax.lax.rsqrt(var + eps)
            # gamma/beta are zero in padded lanes -> padded outputs stay 0.
            out = out * gamma_ref[...] + beta_ref[...]
        o_ref[...] = out


# ----------------------------------------------------------------------------
# Wrapper: adjacency densification (glue), X@W hoist, lane/row padding, tiling.
# ----------------------------------------------------------------------------
def build_gcn_adjacency_padded(edge_index, edge_weight, num_nodes, n_pad):
    """A_hat = D^{-1/2}(A + I)D^{-1/2}, scatter-added straight into the padded
    (n_pad, n_pad) buffer (single f32 pass), returned as bf16."""
    idx = jnp.arange(num_nodes, dtype=edge_index.dtype)
    src = jnp.concatenate([edge_index[0], idx])
    dst = jnp.concatenate([edge_index[1], idx])
    w = jnp.concatenate([edge_weight.astype(jnp.float32),
                         jnp.ones((num_nodes,), dtype=jnp.float32)])
    deg = jnp.zeros((num_nodes,), jnp.float32).at[dst].add(w)
    dinv_sqrt = jnp.where(deg > 0, jax.lax.rsqrt(deg), 0.0)
    norm_w = dinv_sqrt[src] * w * dinv_sqrt[dst]
    # out[dst] += norm * x_lin[src]  =>  A_hat[dst, src]
    adj = jnp.zeros((n_pad, n_pad), jnp.float32).at[dst, src].add(norm_w)
    return adj.astype(jnp.bfloat16)


def _round_up(v, m):
    return ((v + m - 1) // m) * m


def _pick_tile(desired, limit):
    """Largest power-of-two multiple of 128 that is <= min(desired, limit)."""
    t = 128
    while t * 2 <= min(desired, limit):
        t *= 2
    return t


def gtc_sub_conv(x, edge_index, edge_weight, weight, bias, gamma, beta,
                 *, norm, tile_m=512, tile_k=2048):
    """Forward pass of GTCSubConv.

    x: [N, in_dim], weight: [in_dim, out_dim], bias/gamma/beta: [out_dim].
    Returns [N, out_dim] float32.
    """
    n, _ = x.shape
    out_dim = weight.shape[1]

    # ---- tile selection: decouple padding from tile size --------------------
    out_pad = _round_up(out_dim, 128)
    n_pad128 = _round_up(n, 128)
    tile_k = _pick_tile(tile_k, n_pad128)
    # Keep >= 2 row tiles when possible so the "parallel" row axis splits
    # across the 2 TensorCores on v7x.
    row_limit = n_pad128 if n_pad128 < 256 else n_pad128 // 2
    tile_m = _pick_tile(tile_m, row_limit)
    # Both tiles are power-of-two multiples of 128, so rounding to the larger
    # one makes n_pad divisible by both.
    n_pad = _round_up(n, max(tile_m, tile_k))

    # ---- glue: dense normalized adjacency, built padded, streamed as bf16 ---
    adj_bf16 = build_gcn_adjacency_padded(edge_index, edge_weight, n, n_pad)

    # ---- hoisted feature transform X @ W (small; plain XLA matmul) ----------
    w_pad = jnp.zeros((weight.shape[0], out_pad), jnp.float32).at[:, :out_dim].set(
        weight.astype(jnp.float32))
    xw = jnp.dot(x.astype(jnp.float32), w_pad,
                 precision=jax.lax.Precision.HIGHEST)            # [n, out_pad]
    xw_p = jnp.zeros((n_pad, out_pad), jnp.float32).at[:n, :].set(xw)
    xw_bf16 = xw_p.astype(jnp.bfloat16)

    b_pad = jnp.zeros((1, out_pad), jnp.float32).at[0, :out_dim].set(
        bias.astype(jnp.float32).reshape(-1))
    g_pad = jnp.zeros((1, out_pad), jnp.float32).at[0, :out_dim].set(
        gamma.astype(jnp.float32).reshape(-1))
    be_pad = jnp.zeros((1, out_pad), jnp.float32).at[0, :out_dim].set(
        beta.astype(jnp.float32).reshape(-1))

    grid = (n_pad // tile_m, n_pad // tile_k)

    kernel = functools.partial(gcn_agg_kernel, norm=norm, valid_out=out_dim,
                               tile_k=tile_k)

    # Bytes: A_hat once (bf16), XW once (resident, bf16), output once (f32).
    cost = pl.CostEstimate(
        flops=2 * n_pad * n_pad * out_pad,
        transcendentals=n_pad if norm else 0,
        bytes_accessed=(2 * n_pad * n_pad
                        + 2 * n_pad * out_pad
                        + 4 * n_pad * out_pad
                        + 3 * 4 * out_pad),
    )

    # VMEM footprint: double-buffered A tile + resident XW (count 2 bufs
    # conservatively) + double-buffered out tile + params.  Capped at 48 MiB
    # so the same config stays inside v7x's 64 MiB physical VMEM.
    footprint = (2 * tile_m * tile_k * 2
                 + 2 * n_pad * out_pad * 2
                 + 2 * tile_m * out_pad * 4
                 + 6 * out_pad * 4)
    vmem_limit = int(min(48 * 1024 * 1024, max(32 * 1024 * 1024, 2 * footprint)))

    out_p = pl.pallas_call(
        kernel,
        out_shape=jax.ShapeDtypeStruct((n_pad, out_pad), jnp.float32),
        grid_spec=pltpu.PrefetchScalarGridSpec(
            num_scalar_prefetch=0,
            grid=grid,
            in_specs=[
                # A_hat tile: streamed / double-buffered.
                pl.BlockSpec((tile_m, tile_k), lambda i, k: (i, k)),
                # XW: constant block index -> VMEM-resident, DMA'd once.
                pl.BlockSpec((n_pad, out_pad), lambda i, k: (0, 0)),
                pl.BlockSpec((1, out_pad), lambda i, k: (0, 0)),       # bias
                pl.BlockSpec((1, out_pad), lambda i, k: (0, 0)),       # gamma
                pl.BlockSpec((1, out_pad), lambda i, k: (0, 0)),       # beta
            ],
            out_specs=pl.BlockSpec((tile_m, out_pad), lambda i, k: (i, 0)),
        ),
        compiler_params=pltpu.CompilerParams(
            dimension_semantics=("parallel", "arbitrary"),
            vmem_limit_bytes=vmem_limit,
        ),
        cost_estimate=cost,
    )(adj_bf16, xw_bf16, b_pad, g_pad, be_pad)

    return out_p[:n, :out_dim]


# ----------------------------------------------------------------------------
# Demo / correctness check.
# ----------------------------------------------------------------------------
if __name__ == "__main__":
    N, IN_DIM, OUT_DIM, E = 256, 8, 32, 512
    USE_NORM = True  # exercise the LayerNorm branch too (module default is False)

    key = jax.random.PRNGKey(0)
    k_x, k_src, k_dst, k_ew, k_w = jax.random.split(key, 5)

    x = jax.random.normal(k_x, (N, IN_DIM), dtype=jnp.float32)
    edge_index = jnp.stack([
        jax.random.randint(k_src, (E,), 0, N),
        jax.random.randint(k_dst, (E,), 0, N),
    ]).astype(jnp.int32)
    edge_weight = jax.random.uniform(k_ew, (E,), dtype=jnp.float32)

    # GCNConv: Linear(in, out) + bias; LayerNorm(out): gamma/beta.
    weight = jax.random.normal(k_w, (IN_DIM, OUT_DIM), dtype=jnp.float32) * (1.0 / IN_DIM ** 0.5)
    bias = jnp.zeros((OUT_DIM,), jnp.float32)
    gamma = jnp.ones((OUT_DIM,), jnp.float32)
    beta = jnp.zeros((OUT_DIM,), jnp.float32)

    out = gtc_sub_conv(x, edge_index, edge_weight, weight, bias, gamma, beta, norm=USE_NORM)
    out = jax.block_until_ready(out)

    # Pure-JAX reference on the same bf16-quantized streams (f32 accumulate).
    adj_q = build_gcn_adjacency_padded(edge_index, edge_weight, N, N).astype(jnp.float32)
    xw_q = jnp.dot(x, weight, precision=jax.lax.Precision.HIGHEST
                   ).astype(jnp.bfloat16).astype(jnp.float32)
    ref = jnp.dot(adj_q, xw_q, precision=jax.lax.Precision.HIGHEST) + bias[None, :]
    if USE_NORM:
        mu = ref.mean(-1, keepdims=True)
        var = ((ref - mu) ** 2).mean(-1, keepdims=True)
        ref = (ref - mu) / jnp.sqrt(var + 1e-5) * gamma[None, :] + beta[None, :]

    assert out.shape == (N, OUT_DIM)
    assert jnp.allclose(out, ref, atol=2e-3, rtol=2e-3), "mismatch vs reference"

    print("KERNEL_OK")
</pallas_src>

<mosaic_0001>
module attributes {stable_mosaic.version = 11 : i64} {
  func.func @gcn_agg_kernel(%arg0: i32, %arg1: i32, %arg2: memref<128x256xbf16, #tpu.memory_space<vmem>>, %arg3: memref<256x128xbf16, #tpu.memory_space<vmem>>, %arg4: memref<1x128xf32, #tpu.memory_space<vmem>>, %arg5: memref<1x128xf32, #tpu.memory_space<vmem>>, %arg6: memref<1x128xf32, #tpu.memory_space<vmem>>, %arg7: memref<128x128xf32, #tpu.memory_space<vmem>>) attributes {dimension_semantics = [#tpu.dimension_semantics<parallel>, #tpu.dimension_semantics<arbitrary>], iteration_bounds = array<i64: 2, 1>, scalar_prefetch = 0 : i64, scratch_operands = 0 : i64, tpu.core_type = #tpu.core_type<tc>, window_params = [{transform_indices = @transform_0, window_bounds = array<i64: 128, 256>}, {pipeline_mode = #tpu.pipeline_mode<synchronous>, transform_indices = @transform_1, window_bounds = array<i64: 256, 128>}, {pipeline_mode = #tpu.pipeline_mode<synchronous>, transform_indices = @transform_2, window_bounds = array<i64: 1, 128>}, {pipeline_mode = #tpu.pipeline_mode<synchronous>, transform_indices = @transform_3, window_bounds = array<i64: 1, 128>}, {pipeline_mode = #tpu.pipeline_mode<synchronous>, transform_indices = @transform_4, window_bounds = array<i64: 1, 128>}, {transform_indices = @transform_5, window_bounds = array<i64: 128, 128>}]} {
    %c0_i32 = arith.constant 0 : i32
    %0 = arith.cmpi eq, %arg1, %c0_i32 : i32
    %1 = arith.extui %0 : i1 to i32
    %c0_i32_0 = arith.constant 0 : i32
    %2 = arith.cmpi ne, %1, %c0_i32_0 : i32
    scf.if %2 {
      %cst_9 = arith.constant 0.000000e+00 : f32
      %15 = vector.broadcast %cst_9 : f32 to vector<128x128xf32>
      %c0_10 = arith.constant 0 : index
      %c0_11 = arith.constant 0 : index
      %16 = vector.load %arg7[%c0_10, %c0_11] : memref<128x128xf32, #tpu.memory_space<vmem>>, vector<128x128xf32>
      tpu.vector_store %arg7[%c0_10, %c0_11], %15 {strides = array<i32>} : memref<128x128xf32, #tpu.memory_space<vmem>>, vector<128x128xf32>,
    } else {
    }
    %c256_i32 = arith.constant 256 : i32
    %3 = arith.muli %arg1, %c256_i32 : i32
    %4 = tpu.assume_multiple %3, 128 : i32
    %5 = arith.index_cast %4 : i32 to index
    %c0 = arith.constant 0 : index
    %6 = vector.load %arg3[%5, %c0] : memref<256x128xbf16, #tpu.memory_space<vmem>>, vector<256x128xbf16>
    %c0_1 = arith.constant 0 : index
    %c0_2 = arith.constant 0 : index
    %7 = vector.load %arg7[%c0_1, %c0_2] : memref<128x128xf32, #tpu.memory_space<vmem>>, vector<128x128xf32>
    %c0_3 = arith.constant 0 : index
    %c0_4 = arith.constant 0 : index
    %8 = vector.load %arg2[%c0_3, %c0_4] : memref<128x256xbf16, #tpu.memory_space<vmem>>, vector<128x256xbf16>
    %cst = arith.constant dense<0.000000e+00> : vector<128x128xf32>
    %9 = tpu.matmul %8, %6, %cst {dimension_numbers = #tpu.dot_dimension_numbers<[1], [0], [0], [1], [0, 0, 1, 1], [], []>} : vector<128x256xbf16>, vector<256x128xbf16>, vector<128x128xf32> -> vector<128x128xf32>
    %10 = arith.addf %7, %9 : vector<128x128xf32>
    %c0_5 = arith.constant 0 : index
    %c0_6 = arith.constant 0 : index
    %11 = vector.load %arg7[%c0_5, %c0_6] : memref<128x128xf32, #tpu.memory_space<vmem>>, vector<128x128xf32>
    tpu.vector_store %arg7[%c0_5, %c0_6], %10 {strides = array<i32>} : memref<128x128xf32, #tpu.memory_space<vmem>>, vector<128x128xf32>,
    %c0_i32_7 = arith.constant 0 : i32
    %12 = arith.cmpi eq, %arg1, %c0_i32_7 : i32
    %13 = arith.extui %12 : i1 to i32
    %c0_i32_8 = arith.constant 0 : i32
    %14 = arith.cmpi ne, %13, %c0_i32_8 : i32
    scf.if %14 {
      %c0_9 = arith.constant 0 : index
      %c0_10 = arith.constant 0 : index
      %15 = vector.load %arg7[%c0_9, %c0_10] : memref<128x128xf32, #tpu.memory_space<vmem>>, vector<128x128xf32>
      %c0_11 = arith.constant 0 : index
      %c0_12 = arith.constant 0 : index
      %16 = vector.load %arg4[%c0_11, %c0_12] : memref<1x128xf32, #tpu.memory_space<vmem>>, vector<1x128xf32>
      %17 = vector.broadcast %16 : vector<1x128xf32> to vector<128x128xf32>
      %18 = arith.addf %15, %17 : vector<128x128xf32>
      %19 = tpu.iota {dimensions = array<i32: 1>} : vector<128x128xi32>
      %c32_i32 = arith.constant 32 : i32
      %20 = vector.broadcast %c32_i32 : i32 to vector<128x128xi32>
      %21 = arith.cmpi slt, %19, %20 : vector<128x128xi32>
      %cst_13 = arith.constant 0.000000e+00 : f32
      %22 = vector.broadcast %cst_13 : f32 to vector<128x128xf32>
      %23 = arith.select %21, %18, %22 : vector<128x128xi1>, vector<128x128xf32>
      %cst_14 = arith.constant dense<0.000000e+00> : vector<128xf32>
      %24 = vector.multi_reduction <add>, %23, %cst_14 [1] : vector<128x128xf32> to vector<128xf32>
      %25 = vector.shape_cast %24 : vector<128xf32> to vector<128x1xf32>
      %cst_15 = arith.constant 3.200000e+01 : f32
      %26 = vector.broadcast %cst_15 : f32 to vector<128x1xf32>
      %27 = arith.divf %25, %26 : vector<128x1xf32>
      %28 = vector.broadcast %27 : vector<128x1xf32> to vector<128x128xf32>
      %29 = arith.subf %18, %28 : vector<128x128xf32>
      %30 = arith.mulf %29, %29 : vector<128x128xf32>
      %cst_16 = arith.constant 0.000000e+00 : f32
      %31 = vector.broadcast %cst_16 : f32 to vector<128x128xf32>
      %32 = arith.select %21, %30, %31 : vector<128x128xi1>, vector<128x128xf32>
      %cst_17 = arith.constant dense<0.000000e+00> : vector<128xf32>
      %33 = vector.multi_reduction <add>, %32, %cst_17 [1] : vector<128x128xf32> to vector<128xf32>
      %34 = vector.shape_cast %33 : vector<128xf32> to vector<128x1xf32>
      %cst_18 = arith.constant 3.200000e+01 : f32
      %35 = vector.broadcast %cst_18 : f32 to vector<128x1xf32>
      %36 = arith.divf %34, %35 : vector<128x1xf32>
      %cst_19 = arith.constant 9.99999974E-6 : f32
      %37 = vector.broadcast %cst_19 : f32 to vector<128x1xf32>
      %38 = arith.addf %36, %37 : vector<128x1xf32>
      %39 = math.rsqrt %38 : vector<128x1xf32>
      %40 = vector.broadcast %39 : vector<128x1xf32> to vector<128x128xf32>
      %41 = arith.mulf %29, %40 : vector<128x128xf32>
      %c0_20 = arith.constant 0 : index
      %c0_21 = arith.constant 0 : index
      %42 = vector.load %arg5[%c0_20, %c0_21] : memref<1x128xf32, #tpu.memory_space<vmem>>, vector<1x128xf32>
      %43 = vector.broadcast %42 : vector<1x128xf32> to vector<128x128xf32>
      %44 = arith.mulf %41, %43 : vector<128x128xf32>
      %c0_22 = arith.constant 0 : index
      %c0_23 = arith.constant 0 : index
      %45 = vector.load %arg6[%c0_22, %c0_23] : memref<1x128xf32, #tpu.memory_space<vmem>>, vector<1x128xf32>
      %46 = vector.broadcast %45 : vector<1x128xf32> to vector<128x128xf32>
      %47 = arith.addf %44, %46 : vector<128x128xf32>
      %c0_24 = arith.constant 0 : index
      %c0_25 = arith.constant 0 : index
      %48 = vector.load %arg7[%c0_24, %c0_25] : memref<128x128xf32, #tpu.memory_space<vmem>>, vector<128x128xf32>
      tpu.vector_store %arg7[%c0_24, %c0_25], %47 {strides = array<i32>} : memref<128x128xf32, #tpu.memory_space<vmem>>, vector<128x128xf32>,
    } else {
    }
    return
  }
  func.func @transform_0(%arg0: i32, %arg1: i32) -> (i32, i32) {
    %c0_i32 = arith.constant 0 : i32
    return %arg0, %arg1 : i32, i32
  }
  func.func @transform_1(%arg0: i32, %arg1: i32) -> (i32, i32) {
    %c0_i32 = arith.constant 0 : i32
    %c0_i32_0 = arith.constant 0 : i32
    %c0_i32_1 = arith.constant 0 : i32
    return %c0_i32, %c0_i32_0 : i32, i32
  }
  func.func @transform_2(%arg0: i32, %arg1: i32) -> (i32, i32) {
    %c0_i32 = arith.constant 0 : i32
    %c0_i32_0 = arith.constant 0 : i32
    %c0_i32_1 = arith.constant 0 : i32
    return %c0_i32, %c0_i32_0 : i32, i32
  }
  func.func @transform_3(%arg0: i32, %arg1: i32) -> (i32, i32) {
    %c0_i32 = arith.constant 0 : i32
    %c0_i32_0 = arith.constant 0 : i32
    %c0_i32_1 = arith.constant 0 : i32
    return %c0_i32, %c0_i32_0 : i32, i32
  }
  func.func @transform_4(%arg0: i32, %arg1: i32) -> (i32, i32) {
    %c0_i32 = arith.constant 0 : i32
    %c0_i32_0 = arith.constant 0 : i32
    %c0_i32_1 = arith.constant 0 : i32
    return %c0_i32, %c0_i32_0 : i32, i32
  }
  func.func @transform_5(%arg0: i32, %arg1: i32) -> (i32, i32) {
    %c0_i32 = arith.constant 0 : i32
    %c0_i32_0 = arith.constant 0 : i32
    return %arg0, %c0_i32 : i32, i32
  }
}

</mosaic_0001>

<llo_original>
// kernel: tpu_custom_call.1
$region0: #{tpu_custom_call.1}
  #allocation0 [shape = 'u32[]', space=smem, size = 0x4, offset = 0x4, fixed_abs, tag = 'smem constant byte address 0x4 - core index']
  #allocation1 [shape = 'u32[72,128]{1,0:T(1,128)}', space=vmem, size = 0x9000, scoped, tag = 'internal scratch']
  %s0 = inlined_call_operand.hbm [shape: bf16[256,256], index: 0, kind: input, shape index: {}]
  %s1 = inlined_call_operand.hbm [shape: bf16[256,128], index: 1, kind: input, shape index: {}]
  %s2 = inlined_call_operand.vmem [shape: f32[1,128], index: 2, kind: input, shape index: {}]
  %s3 = inlined_call_operand.vmem [shape: f32[1,128], index: 3, kind: input, shape index: {}]
  %s4 = inlined_call_operand.vmem [shape: f32[1,128], index: 4, kind: input, shape index: {}]
  %s5 = inlined_call_operand.hbm [shape: f32[256,128], index: 5, kind: output, shape index: {}]
  %s6 = sld [smem:[#allocation0]]
  $region69: #{tpu_custom_call.1} parent=0
    _
  %s8 = ssub.s32 1, %s6
  %s9 = scalar_select 0, %s8, %s6
  $region1: #{tpu_custom_call.1} parent=0
    #allocation2 [shape = 'u8[131072]{0}', space=vmem, size = 0x20000, scoped, tag = 'input window, operand 0']
    #allocation3 [shape = 's32[2]{0}', space=sflag, size = 0x8, scoped, tag = 'scoped memory for tpu_custom_call.1']
    #allocation4 [shape = 's32[2]{0}', space=sflag, size = 0x8, scoped, tag = 'scoped memory for tpu_custom_call.1']
    #allocation5 [shape = 'u8[65536]{0}', space=vmem, size = 0x10000, scoped, tag = 'input window, operand 1, single buffered']
    #allocation6 [shape = 's32[1]{0}', space=sflag, size = 0x4, scoped, tag = 'scoped memory for tpu_custom_call.1']
    #allocation7 [shape = 'u8[131072]{0}', space=vmem, size = 0x20000, scoped, tag = 'output window, operand 0']
    %10 = vsyncpa [#allocation3], 0
    %s11 = scalar_lea.sflag [#allocation3], 1
    %12 = vsyncpa %s11, 0
    %13 = vsyncpa [#allocation6], 0
    %14 = vsyncpa [#allocation4], 0
    %s15 = scalar_lea.sflag [#allocation4], 1
    %16 = vsyncpa %s15, 0
    loop: start=0, step=1, limit=4
    $region2: #{tpu_custom_call.1} parent=1 // loop_pre_header
      _
    $region3: #{tpu_custom_call.1} parent=1 // loop_header
      %s18 = sphi 0, %s22
      %p19 = scmp.ge.s32.totalorder %s18, 4
      %s25 = sphi 0, %s37
      %s26 = sphi 0, %s33
      %s27 = sphi 0, %s25
      %s28 = sphi 0, %s26
      %s29 = sphi 0, %s27
      %s30 = sphi 0, %s28
      %s42 = sphi 0, %s44
      %s45 = sphi 0, %s42
      %s46 = sphi 0, %s45
      %s62 = sphi 0, %s46
      %s66 = sphi 0, %s66
      %s68 = sphi 0, %s66
      %s69 = sphi 0, %s68
      %s83 = sphi 0, %s69
      %s87 = sphi 0, %s87
      %s89 = sphi 0, %s87
      %s90 = sphi 0, %s89
      %s104 = sphi 0, %s90
      %s108 = sphi 0, %s108
      %s110 = sphi 0, %s108
      %s111 = sphi 0, %s110
      %s125 = sphi 0, %s111
      %s129 = sphi 0, %s129
      %s131 = sphi 0, %s129
      %s132 = sphi 0, %s131
      %s146 = sphi 0, %s132
      %s152 = sphi 0, %s154
      %s155 = sphi 0, %s152
      %s156 = sphi 0, %s155
      %s172 = sphi 0, %s156
    $region4: #{tpu_custom_call.1} parent=1 // loop_header_branch
      %21 = sbr.rel (%p19) target = $region8
    $region5: #{tpu_custom_call.1} parent=1 // loop_body
      %s23 = ssub.s32 %s18, 1
      %s24 = ssub.s32 %s18, 2
      %s31 = sadd.s32 1, %s26
      %p32 = scmp.ge.s32.totalorder %s31, 1
      %s33 = scalar_select %p32, 0, %s31
      %s34 = sadd.s32 1, %s25
      %s35 = scalar_select %p32, %s34, %s25
      %p36 = scmp.ge.s32.totalorder %s35, 2
      %s37 = scalar_select %p36, 0, %s35
      %s38 = ssub.s32 %s25, %s37
      %s39 = ssub.s32 %s26, %s33
      %s40 = sor.u32 %s38, %s39
      %p41 = scmp.eq.s32.totalorder %s40, 0
      %s43 = sadd.s32 %s42, 1
      %s44 = scalar_select %p41, %s42, %s43
      %p47 = pneg %p41
      %p48 = scmp.eq.s32.totalorder %s18, 1
      %p49 = por %p47, %p48
      %p50 = scmp.ne.s32.totalorder %s42, %s45
      %p51 = scmp.eq.s32.totalorder %s18, 0
      %p52 = por %p50, %p51
      %p53 = scmp.ne.s32.totalorder %s42, %s45
      %p54 = scmp.eq.s32.totalorder %s23, 1
      %p55 = por %p53, %p54
      %p56 = scmp.ne.s32.totalorder %s45, %s46
      %p57 = scmp.eq.s32.totalorder %s23, 0
      %p58 = por %p56, %p57
      %p59 = scmp.ne.s32.totalorder %s45, %s46
      %p60 = scmp.eq.s32.totalorder %s24, 1
      %p61 = por %p59, %p60
      %p63 = scmp.ne.s32.totalorder %s46, %s62
      %p64 = scmp.eq.s32.totalorder %s24, 0
      %p65 = por %p63, %p64
      %s67 = sadd.s32 %s66, 1
      %p70 = scmp.eq.s32.totalorder %s18, 1
      %p71 = scmp.ne.s32.totalorder %s66, %s68
      %p72 = scmp.eq.s32.totalorder %s18, 0
      %p73 = por %p71, %p72
      %p74 = scmp.ne.s32.totalorder %s66, %s68
      %p75 = scmp.eq.s32.totalorder %s23, 1
      %p76 = por %p74, %p75
      %p77 = scmp.ne.s32.totalorder %s68, %s69
      %p78 = scmp.eq.s32.totalorder %s23, 0
      %p79 = por %p77, %p78
      %p80 = scmp.ne.s32.totalorder %s68, %s69
      %p81 = scmp.eq.s32.totalorder %s24, 1
      %p82 = por %p80, %p81
      %p84 = scmp.ne.s32.totalorder %s69, %s83
      %p85 = scmp.eq.s32.totalorder %s24, 0
      %p86 = por %p84, %p85
      %s88 = sadd.s32 %s87, 1
      %p91 = scmp.eq.s32.totalorder %s18, 1
      %p92 = scmp.ne.s32.totalorder %s87, %s89
      %p93 = scmp.eq.s32.totalorder %s18, 0
      %p94 = por %p92, %p93
      %p95 = scmp.ne.s32.totalorder %s87, %s89
      %p96 = scmp.eq.s32.totalorder %s23, 1
      %p97 = por %p95, %p96
      %p98 = scmp.ne.s32.totalorder %s89, %s90
      %p99 = scmp.eq.s32.totalorder %s23, 0
      %p100 = por %p98, %p99
      %p101 = scmp.ne.s32.totalorder %s89, %s90
      %p102 = scmp.eq.s32.totalorder %s24, 1
      %p103 = por %p101, %p102
      %p105 = scmp.ne.s32.totalorder %s90, %s104
      %p106 = scmp.eq.s32.totalorder %s24, 0
      %p107 = por %p105, %p106
      %s109 = sadd.s32 %s108, 1
      %p112 = scmp.eq.s32.totalorder %s18, 1
      %p113 = scmp.ne.s32.totalorder %s108, %s110
      %p114 = scmp.eq.s32.totalorder %s18, 0
      %p115 = por %p113, %p114
      %p116 = scmp.ne.s32.totalorder %s108, %s110
      %p117 = scmp.eq.s32.totalorder %s23, 1
      %p118 = por %p116, %p117
      %p119 = scmp.ne.s32.totalorder %s110, %s111
      %p120 = scmp.eq.s32.totalorder %s23, 0
      %p121 = por %p119, %p120
      %p122 = scmp.ne.s32.totalorder %s110, %s111
      %p123 = scmp.eq.s32.totalorder %s24, 1
      %p124 = por %p122, %p123
      %p126 = scmp.ne.s32.totalorder %s111, %s125
      %p127 = scmp.eq.s32.totalorder %s24, 0
      %p128 = por %p126, %p127
      %s130 = sadd.s32 %s129, 1
      %p133 = scmp.eq.s32.totalorder %s18, 1
      %p134 = scmp.ne.s32.totalorder %s129, %s131
      %p135 = scmp.eq.s32.totalorder %s18, 0
      %p136 = por %p134, %p135
      %p137 = scmp.ne.s32.totalorder %s129, %s131
      %p138 = scmp.eq.s32.totalorder %s23, 1
      %p139 = por %p137, %p138
      %p140 = scmp.ne.s32.totalorder %s131, %s132
      %p141 = scmp.eq.s32.totalorder %s23, 0
      %p142 = por %p140, %p141
      %p143 = scmp.ne.s32.totalorder %s131, %s132
      %p144 = scmp.eq.s32.totalorder %s24, 1
      %p145 = por %p143, %p144
      %p147 = scmp.ne.s32.totalorder %s132, %s146
      %p148 = scmp.eq.s32.totalorder %s24, 0
      %p149 = por %p147, %p148
      %s150 = ssub.s32 %s25, %s37
      %p151 = scmp.eq.s32.totalorder %s150, 0
      %s153 = sadd.s32 %s152, 1
      %s154 = scalar_select %p151, %s152, %s153
      %p157 = pneg %p151
      %p158 = scmp.eq.s32.totalorder %s18, 1
      %p159 = por %p157, %p158
      %p160 = scmp.ne.s32.totalorder %s152, %s155
      %p161 = scmp.eq.s32.totalorder %s18, 0
      %p162 = por %p160, %p161
      %p163 = scmp.ne.s32.totalorder %s152, %s155
      %p164 = scmp.eq.s32.totalorder %s23, 1
      %p165 = por %p163, %p164
      %p166 = scmp.ne.s32.totalorder %s155, %s156
      %p167 = scmp.eq.s32.totalorder %s23, 0
      %p168 = por %p166, %p167
      %p169 = scmp.ne.s32.totalorder %s155, %s156
      %p170 = scmp.eq.s32.totalorder %s24, 1
      %p171 = por %p169, %p170
      %p173 = scmp.ne.s32.totalorder %s156, %s172
      %p174 = scmp.eq.s32.totalorder %s24, 0
      %p175 = por %p173, %p174
      %p176 = scmp.le.s32.totalorder 1, %s18
      %p177 = scmp.lt.s32.totalorder %s18, 3
      %p178 = pnand %p176, %p177
      %p179 = pneg %p178
      // Predicated region
      $region9: #{tpu_custom_call.1} parent=5 // pred_check
        _
      $region10: #{tpu_custom_call.1} parent=5 // pred_check_branch
        %181 = sbr.rel (%p178) target = $region12
      $region11: #{tpu_custom_call.1} parent=5 // pred_region
        %s182 = ssub.s32 %s18, 1
        // Predicated region
        $region13: #{tpu_custom_call.1} parent=11 // pred_check
          %p183 = pneg %p79
        $region14: #{tpu_custom_call.1} parent=11 // pred_check_branch
          %185 = sbr.rel (%p183) target = $region16
        $region15: #{tpu_custom_call.1} parent=11 // pred_region
          %187 = vsyncadd [#allocation6], 0
          %s188 = sshll.u32 %s1, 4
          %s189 = int_to_ptr.hbm [resolvable:$true] %s188
          %s190 = sshll.u32 [#allocation5], 4
          %s191 = int_to_ptr.vmem [resolvable:$true] %s190
          %196 = dma.hbm_to_vmem [thread:$0]  %s189, 2048, %s191, [#allocation6], 64, 64, 4
        $region16: #{tpu_custom_call.1} parent=11 // pred_fallthru
          _
        // Predicated region
        $region17: #{tpu_custom_call.1} parent=11 // pred_check
          %p197 = pneg %p100
        $region18: #{tpu_custom_call.1} parent=11 // pred_check_branch
          %199 = sbr.rel (%p197) target = $region20
        $region19: #{tpu_custom_call.1} parent=11 // pred_region
          _
        $region20: #{tpu_custom_call.1} parent=11 // pred_fallthru
          _
        // Predicated region
        $region21: #{tpu_custom_call.1} parent=11 // pred_check
          %p200 = pneg %p121
        $region22: #{tpu_custom_call.1} parent=11 // pred_check_branch
          %202 = sbr.rel (%p200) target = $region24
        $region23: #{tpu_custom_call.1} parent=11 // pred_region
          _
        $region24: #{tpu_custom_call.1} parent=11 // pred_fallthru
          _
        // Predicated region
        $region25: #{tpu_custom_call.1} parent=11 // pred_check
          %p203 = pneg %p142
        $region26: #{tpu_custom_call.1} parent=11 // pred_check_branch
          %205 = sbr.rel (%p203) target = $region28
        $region27: #{tpu_custom_call.1} parent=11 // pred_region
          _
        $region28: #{tpu_custom_call.1} parent=11 // pred_fallthru
          _
      $region12: #{tpu_custom_call.1} parent=5 // pred_fallthru
        _
      %p206 = scmp.lt.s32.totalorder %s18, 2
      // Predicated region
      $region29: #{tpu_custom_call.1} parent=5 // pred_check
        %p207 = pneg %p206
      $region30: #{tpu_custom_call.1} parent=5 // pred_check_branch
        %209 = sbr.rel (%p207) target = $region32
      $region31: #{tpu_custom_call.1} parent=5 // pred_region
        // Predicated region
        $region33: #{tpu_custom_call.1} parent=31 // pred_check
          %p210 = pneg %p52
        $region34: #{tpu_custom_call.1} parent=31 // pred_check_branch
          %212 = sbr.rel (%p210) target = $region36
        $region35: #{tpu_custom_call.1} parent=31 // pred_region
          %s213 = sand.u32 %s42, 1
          %s214 = scalar_lea.sflag [#allocation3], %s213
          %s215 = sand.u32 %s42, 1
          %s216 = smul.addr %s215, 128
          %s217 = scalar_lea.vmem [#allocation2], %s216
          %s218 = smul.u32 16, %s25
          %s219 = smul.u32 2, %s26
          %221 = vsyncadd %s214, 0
          %s222 = smul.addr %s218, 2
          %s223 = sadd.s32 %s219, %s222
          %s224 = smul.addr %s223, 4
          %s225 = scalar_lea.hbm %s0, %s224
          %s226 = sshll.u32 %s225, 4
          %s227 = int_to_ptr.hbm [resolvable:$true] %s226
          %s228 = sshll.u32 %s217, 4
          %s229 = int_to_ptr.vmem [resolvable:$true] %s228
          %234 = dma.hbm_to_vmem [thread:$0]  %s227, 2048, %s229, %s214, 128, 128, 8
        $region36: #{tpu_custom_call.1} parent=31 // pred_fallthru
          _
      $region32: #{tpu_custom_call.1} parent=5 // pred_fallthru
        _
      %p235 = scmp.le.s32.totalorder 1, %s18
      %p236 = scmp.lt.s32.totalorder %s18, 3
      %p237 = pnand %p235, %p236
      %p238 = pneg %p237
      // Predicated region
      $region37: #{tpu_custom_call.1} parent=5 // pred_check
        _
      $region38: #{tpu_custom_call.1} parent=5 // pred_check_branch
        %240 = sbr.rel (%p237) target = $region40
      $region39: #{tpu_custom_call.1} parent=5 // pred_region
        %s241 = ssub.s32 %s18, 1
        %s242 = sand.u32 %s45, 1
        %s243 = scalar_lea.sflag [#allocation3], %s242
        %s244 = sand.u32 %s45, 1
        %s245 = smul.addr %s244, 128
        %s246 = scalar_lea.vmem [#allocation2], %s245
        // Predicated region
        $region41: #{tpu_custom_call.1} parent=39 // pred_check
          %p247 = pneg %p58
        $region42: #{tpu_custom_call.1} parent=39 // pred_check_branch
          %249 = sbr.rel (%p247) target = $region44
        $region43: #{tpu_custom_call.1} parent=39 // pred_region
          %251 = dma.done %s243, 2048
        $region44: #{tpu_custom_call.1} parent=39 // pred_fallthru
          _
        // Predicated region
        $region45: #{tpu_custom_call.1} parent=39 // pred_check
          %p252 = pneg %p79
        $region46: #{tpu_custom_call.1} parent=39 // pred_check_branch
          %254 = sbr.rel (%p252) target = $region48
        $region47: #{tpu_custom_call.1} parent=39 // pred_region
          %256 = dma.done [#allocation6], 2048
        $region48: #{tpu_custom_call.1} parent=39 // pred_fallthru
          _
        %s257 = sand.u32 %s45, 1
        %s258 = scalar_lea.sflag [#allocation3], %s257
        %s259 = sand.u32 %s45, 1
        %s260 = smul.addr %s259, 128
        %s261 = scalar_lea.vmem [#allocation2], %s260
        %p262 = pneg %p58
        %p263 = pneg %p55
        %p264 = pneg %p79
        %p265 = pneg %p76
        %p266 = pneg %p100
        %p267 = pneg %p97
        %p268 = pneg %p121
        %p269 = pneg %p118
        %p270 = pneg %p142
        %p271 = pneg %p139
        %p272 = pneg %p168
        %p273 = pneg %p165
        %s274 = sand.u32 %s155, 1
        %s275 = scalar_lea.sflag [#allocation4], %s274
        %s276 = sand.u32 %s155, 1
        %s277 = smul.addr %s276, 128
        %s278 = scalar_lea.vmem [#allocation7], %s277
        %s279 = smul.u32 16, %s27
        %s280 = smul.u32 2, %s28
        %s281 = smul.u32 16, %s27
        %p282 = scmp.eq.s32.totalorder %s28, 0
        // Predicated region
        $region49: #{tpu_custom_call.1} parent=39 // pred_check
          %p283 = pneg %p282
        $region50: #{tpu_custom_call.1} parent=39 // pred_check_branch
          %285 = sbr.rel (%p283) target = $region52
        $region51: #{tpu_custom_call.1} parent=39 // pred_region
          %286 = vst [vmem:[%s278] sm:$0xff] 0.0
          %287 = vst [vmem:[%s278 + $0x8] sm:$0xff] 0.0
          %288 = vst [vmem:[%s278 + $0x10] sm:$0xff] 0.0
          %289 = vst [vmem:[%s278 + $0x18] sm:$0xff] 0.0
          %290 = vst [vmem:[%s278 + $0x20] sm:$0xff] 0.0
          %291 = vst [vmem:[%s278 + $0x28] sm:$0xff] 0.0
          %292 = vst [vmem:[%s278 + $0x30] sm:$0xff] 0.0
          %293 = vst [vmem:[%s278 + $0x38] sm:$0xff] 0.0
          %294 = vst [vmem:[%s278 + $0x40] sm:$0xff] 0.0
          %295 = vst [vmem:[%s278 + $0x48] sm:$0xff] 0.0
          %296 = vst [vmem:[%s278 + $0x50] sm:$0xff] 0.0
          %297 = vst [vmem:[%s278 + $0x58] sm:$0xff] 0.0
          %298 = vst [vmem:[%s278 + $0x60] sm:$0xff] 0.0
          %299 = vst [vmem:[%s278 + $0x68] sm:$0xff] 0.0
          %300 = vst [vmem:[%s278 + $0x70] sm:$0xff] 0.0
          %301 = vst [vmem:[%s278 + $0x78] sm:$0xff] 0.0
        $region52: #{tpu_custom_call.1} parent=39 // pred_fallthru
          _
        %s302 = smul.u32 %s28, 256
        %s303 = sshra.s32 %s302, 3
        %s304 = sand.u32 %s302, 7
        %s305 = smul.addr %s303, 4
        %s306 = scalar_lea.vmem [#allocation5], %s305
        %v307 = vld [vmem:[%s306] sm:$0xf]
        %v308 = vld [vmem:[%s306 + $0x4] sm:$0xf]
        %v309 = vld [vmem:[%s306 + $0x8] sm:$0xf]
        %v310 = vld [vmem:[%s306 + $0xc] sm:$0xf]
        %v311 = vld [vmem:[%s306 + $0x10] sm:$0xf]
        %v312 = vld [vmem:[%s306 + $0x14] sm:$0xf]
        %v313 = vld [vmem:[%s306 + $0x18] sm:$0xf]
        %v314 = vld [vmem:[%s306 + $0x1c] sm:$0xf]
        %v315 = vld [vmem:[%s306 + $0x20] sm:$0xf]
        %v316 = vld [vmem:[%s306 + $0x24] sm:$0xf]
        %v317 = vld [vmem:[%s306 + $0x28] sm:$0xf]
        %v318 = vld [vmem:[%s306 + $0x2c] sm:$0xf]
        %v319 = vld [vmem:[%s306 + $0x30] sm:$0xf]
        %v320 = vld [vmem:[%s306 + $0x34] sm:$0xf]
        %v321 = vld [vmem:[%s306 + $0x38] sm:$0xf]
        %v322 = vld [vmem:[%s306 + $0x3c] sm:$0xf]
        %v323 = vld [vmem:[%s306 + $0x40] sm:$0xf]
        %v324 = vld [vmem:[%s306 + $0x44] sm:$0xf]
        %v325 = vld [vmem:[%s306 + $0x48] sm:$0xf]
        %v326 = vld [vmem:[%s306 + $0x4c] sm:$0xf]
        %v327 = vld [vmem:[%s306 + $0x50] sm:$0xf]
        %v328 = vld [vmem:[%s306 + $0x54] sm:$0xf]
        %v329 = vld [vmem:[%s306 + $0x58] sm:$0xf]
        %v330 = vld [vmem:[%s306 + $0x5c] sm:$0xf]
        %v331 = vld [vmem:[%s306 + $0x60] sm:$0xf]
        %v332 = vld [vmem:[%s306 + $0x64] sm:$0xf]
        %v333 = vld [vmem:[%s306 + $0x68] sm:$0xf]
        %v334 = vld [vmem:[%s306 + $0x6c] sm:$0xf]
        %v335 = vld [vmem:[%s306 + $0x70] sm:$0xf]
        %v336 = vld [vmem:[%s306 + $0x74] sm:$0xf]
        %v337 = vld [vmem:[%s306 + $0x78] sm:$0xf]
        %v338 = vld [vmem:[%s306 + $0x7c] sm:$0xf]
        %v339 = vld [vmem:[%s278] sm:$0xff]
        %v340 = vld [vmem:[%s278 + $0x8] sm:$0xff]
        %v341 = vld [vmem:[%s278 + $0x10] sm:$0xff]
        %v342 = vld [vmem:[%s278 + $0x18] sm:$0xff]
        %v343 = vld [vmem:[%s278 + $0x20] sm:$0xff]
        %v344 = vld [vmem:[%s278 + $0x28] sm:$0xff]
        %v345 = vld [vmem:[%s278 + $0x30] sm:$0xff]
        %v346 = vld [vmem:[%s278 + $0x38] sm:$0xff]
        %v347 = vld [vmem:[%s278 + $0x40] sm:$0xff]
        %v348 = vld [vmem:[%s278 + $0x48] sm:$0xff]
        %v349 = vld [vmem:[%s278 + $0x50] sm:$0xff]
        %v350 = vld [vmem:[%s278 + $0x58] sm:$0xff]
        %v351 = vld [vmem:[%s278 + $0x60] sm:$0xff]
        %v352 = vld [vmem:[%s278 + $0x68] sm:$0xff]
        %v353 = vld [vmem:[%s278 + $0x70] sm:$0xff]
        %v354 = vld [vmem:[%s278 + $0x78] sm:$0xff]
        %v355 = vld [vmem:[%s246] sm:$0xff]
        %v356 = vld [vmem:[%s246 + $0x8] sm:$0xff]
        %v357 = vld [vmem:[%s246 + $0x10] sm:$0xff]
        %v358 = vld [vmem:[%s246 + $0x18] sm:$0xff]
        %v359 = vld [vmem:[%s246 + $0x20] sm:$0xff]
        %v360 = vld [vmem:[%s246 + $0x28] sm:$0xff]
        %v361 = vld [vmem:[%s246 + $0x30] sm:$0xff]
        %v362 = vld [vmem:[%s246 + $0x38] sm:$0xff]
        %v363 = vld [vmem:[%s246 + $0x40] sm:$0xff]
        %v364 = vld [vmem:[%s246 + $0x48] sm:$0xff]
        %v365 = vld [vmem:[%s246 + $0x50] sm:$0xff]
        %v366 = vld [vmem:[%s246 + $0x58] sm:$0xff]
        %v367 = vld [vmem:[%s246 + $0x60] sm:$0xff]
        %v368 = vld [vmem:[%s246 + $0x68] sm:$0xff]
        %v369 = vld [vmem:[%s246 + $0x70] sm:$0xff]
        %v370 = vld [vmem:[%s246 + $0x78] sm:$0xff]
        %v387 = vunpack.c.l.b16 %v355
        %v388 = vunpack.c.h.b16 %v355
        %v389 = vunpack.c.l.b16 %v356
        %v390 = vunpack.c.h.b16 %v356
        %v391 = vunpack.c.l.b16 %v357
        %v392 = vunpack.c.h.b16 %v357
        %v393 = vunpack.c.l.b16 %v358
        %v394 = vunpack.c.h.b16 %v358
        %v395 = vunpack.c.l.b16 %v359
        %v396 = vunpack.c.h.b16 %v359
        %v397 = vunpack.c.l.b16 %v360
        %v398 = vunpack.c.h.b16 %v360
        %v399 = vunpack.c.l.b16 %v361
        %v400 = vunpack.c.h.b16 %v361
        %v401 = vunpack.c.l.b16 %v362
        %v402 = vunpack.c.h.b16 %v362
        %v403 = vunpack.c.l.b16 %v363
        %v404 = vunpack.c.h.b16 %v363
        %v405 = vunpack.c.l.b16 %v364
        %v406 = vunpack.c.h.b16 %v364
        %v407 = vunpack.c.l.b16 %v365
        %v408 = vunpack.c.h.b16 %v365
        %v409 = vunpack.c.l.b16 %v366
        %v410 = vunpack.c.h.b16 %v366
        %v411 = vunpack.c.l.b16 %v367
        %v412 = vunpack.c.h.b16 %v367
        %v413 = vunpack.c.l.b16 %v368
        %v414 = vunpack.c.h.b16 %v368
        %v415 = vunpack.c.l.b16 %v369
        %v416 = vunpack.c.h.b16 %v369
        %v417 = vunpack.c.l.b16 %v370
        %v418 = vunpack.c.h.b16 %v370
        %v419 = vpack.c.b16 %v389, %v387
        %v420 = vpack.c.b16 %v390, %v388
        %v421 = vpack.c.b16 %v393, %v391
        %v422 = vpack.c.b16 %v394, %v392
        %v423 = vpack.c.b16 %v397, %v395
        %v424 = vpack.c.b16 %v398, %v396
        %v425 = vpack.c.b16 %v401, %v399
        %v426 = vpack.c.b16 %v402, %v400
        %v427 = vpack.c.b16 %v405, %v403
        %v428 = vpack.c.b16 %v406, %v404
        %v429 = vpack.c.b16 %v409, %v407
        %v430 = vpack.c.b16 %v410, %v408
        %v431 = vpack.c.b16 %v413, %v411
        %v432 = vpack.c.b16 %v414, %v412
        %v433 = vpack.c.b16 %v417, %v415
        %v434 = vpack.c.b16 %v418, %v416
        %v483 = vunpack.c.l.b16 %v307
        %v484 = vunpack.c.l.b16 %v308
        %v485 = vunpack.c.l.b16 %v309
        %v486 = vunpack.c.l.b16 %v310
        %v487 = vunpack.c.l.b16 %v311
        %v488 = vunpack.c.l.b16 %v312
        %v489 = vunpack.c.l.b16 %v313
        %v490 = vunpack.c.l.b16 %v314
        %v491 = vunpack.c.l.b16 %v315
        %v492 = vunpack.c.l.b16 %v316
        %v493 = vunpack.c.l.b16 %v317
        %v494 = vunpack.c.l.b16 %v318
        %v495 = vunpack.c.l.b16 %v319
        %v496 = vunpack.c.l.b16 %v320
        %v497 = vunpack.c.l.b16 %v321
        %v498 = vunpack.c.l.b16 %v322
        %v499 = vunpack.c.l.b16 %v323
        %v500 = vunpack.c.l.b16 %v324
        %v501 = vunpack.c.l.b16 %v325
        %v502 = vunpack.c.l.b16 %v326
        %v503 = vunpack.c.l.b16 %v327
        %v504 = vunpack.c.l.b16 %v328
        %v505 = vunpack.c.l.b16 %v329
        %v506 = vunpack.c.l.b16 %v330
        %v507 = vunpack.c.l.b16 %v331
        %v508 = vunpack.c.l.b16 %v332
        %v509 = vunpack.c.l.b16 %v333
        %v510 = vunpack.c.l.b16 %v334
        %v511 = vunpack.c.l.b16 %v335
        %v512 = vunpack.c.l.b16 %v336
        %v513 = vunpack.c.l.b16 %v337
        %v514 = vunpack.c.l.b16 %v338
        %v515 = vpack.c.b16 %v484, %v483
        %v516 = vpack.c.b16 %v486, %v485
        %v517 = vpack.c.b16 %v488, %v487
        %v518 = vpack.c.b16 %v490, %v489
        %v519 = vpack.c.b16 %v492, %v491
        %v520 = vpack.c.b16 %v494, %v493
        %v521 = vpack.c.b16 %v496, %v495
        %v522 = vpack.c.b16 %v498, %v497
        %v523 = vpack.c.b16 %v500, %v499
        %v524 = vpack.c.b16 %v502, %v501
        %v525 = vpack.c.b16 %v504, %v503
        %v526 = vpack.c.b16 %v506, %v505
        %v527 = vpack.c.b16 %v508, %v507
        %v528 = vpack.c.b16 %v510, %v509
        %v529 = vpack.c.b16 %v512, %v511
        %v530 = vpack.c.b16 %v514, %v513
        %547 = vmatpush.bf16.msra.mxu0 %v522
        %548 = vmatpush.bf16.msra.mxu0 %v521
        %549 = vmatpush.bf16.msra.mxu0 %v520
        %550 = vmatpush.bf16.msra.mxu0 %v519
        %551 = vmatpush.bf16.msra.mxu0 %v518
        %552 = vmatpush.bf16.msra.mxu0 %v517
        %553 = vmatpush.bf16.msra.mxu0 %v516
        %554 = vmatpush.bf16.msra.mxu0 %v515
        %555 = vmatmul.bf16.gmra.mxu0 %v419
        %v556 = vpop.f32.mrf.mxu0
        %v557 = vadd.f32 0.0, %v556
        %v558 = vpop.f32.mrf.mxu0
        %v559 = vadd.f32 0.0, %v558
        %560 = vmatmul.bf16.gmra.mxu0 %v421
        %v561 = vpop.f32.mrf.mxu0
        %v562 = vadd.f32 0.0, %v561
        %v563 = vpop.f32.mrf.mxu0
        %v564 = vadd.f32 0.0, %v563
        %565 = vmatmul.bf16.gmra.mxu0 %v423
        %v566 = vpop.f32.mrf.mxu0
        %v567 = vadd.f32 0.0, %v566
        %v568 = vpop.f32.mrf.mxu0
        %v569 = vadd.f32 0.0, %v568
        %570 = vmatmul.bf16.gmra.mxu0 %v425
        %v571 = vpop.f32.mrf.mxu0
        %v572 = vadd.f32 0.0, %v571
        %v573 = vpop.f32.mrf.mxu0
        %v574 = vadd.f32 0.0, %v573
        %575 = vmatmul.bf16.gmra.mxu0 %v427
        %v576 = vpop.f32.mrf.mxu0
        %v577 = vadd.f32 0.0, %v576
        %v578 = vpop.f32.mrf.mxu0
        %v579 = vadd.f32 0.0, %v578
        %580 = vmatmul.bf16.gmra.mxu0 %v429
        %v581 = vpop.f32.mrf.mxu0
        %v582 = vadd.f32 0.0, %v581
        %v583 = vpop.f32.mrf.mxu0
        %v584 = vadd.f32 0.0, %v583
        %585 = vmatmul.bf16.gmra.mxu0 %v431
        %v586 = vpop.f32.mrf.mxu0
        %v587 = vadd.f32 0.0, %v586
        %v588 = vpop.f32.mrf.mxu0
        %v589 = vadd.f32 0.0, %v588
        %590 = vmatmul.bf16.gmra.mxu0 %v433
        %v591 = vpop.f32.mrf.mxu0
        %v592 = vadd.f32 0.0, %v591
        %v593 = vpop.f32.mrf.mxu0
        %v594 = vadd.f32 0.0, %v593
        %595 = vdwg.mxu0
        %596 = vmatpush.bf16.msra.mxu0 %v530
        %597 = vmatpush.bf16.msra.mxu0 %v529
        %598 = vmatpush.bf16.msra.mxu0 %v528
        %599 = vmatpush.bf16.msra.mxu0 %v527
        %600 = vmatpush.bf16.msra.mxu0 %v526
        %601 = vmatpush.bf16.msra.mxu0 %v525
        %602 = vmatpush.bf16.msra.mxu0 %v524
        %603 = vmatpush.bf16.msra.mxu0 %v523
        %604 = vmatmul.bf16.gmra.mxu0 %v420
        %v605 = vpop.f32.mrf.mxu0
        %v606 = vadd.f32 %v557, %v605
        %v607 = vpop.f32.mrf.mxu0
        %v608 = vadd.f32 %v559, %v607
        %609 = vmatmul.bf16.gmra.mxu0 %v422
        %v610 = vpop.f32.mrf.mxu0
        %v611 = vadd.f32 %v562, %v610
        %v612 = vpop.f32.mrf.mxu0
        %v613 = vadd.f32 %v564, %v612
        %614 = vmatmul.bf16.gmra.mxu0 %v424
        %v615 = vpop.f32.mrf.mxu0
        %v616 = vadd.f32 %v567, %v615
        %v617 = vpop.f32.mrf.mxu0
        %v618 = vadd.f32 %v569, %v617
        %619 = vmatmul.bf16.gmra.mxu0 %v426
        %v620 = vpop.f32.mrf.mxu0
        %v621 = vadd.f32 %v572, %v620
        %v622 = vpop.f32.mrf.mxu0
        %v623 = vadd.f32 %v574, %v622
        %624 = vmatmul.bf16.gmra.mxu0 %v428
        %v625 = vpop.f32.mrf.mxu0
        %v626 = vadd.f32 %v577, %v625
        %v627 = vpop.f32.mrf.mxu0
        %v628 = vadd.f32 %v579, %v627
        %629 = vmatmul.bf16.gmra.mxu0 %v430
        %v630 = vpop.f32.mrf.mxu0
        %v631 = vadd.f32 %v582, %v630
        %v632 = vpop.f32.mrf.mxu0
        %v633 = vadd.f32 %v584, %v632
        %634 = vmatmul.bf16.gmra.mxu0 %v432
        %v635 = vpop.f32.mrf.mxu0
        %v636 = vadd.f32 %v587, %v635
        %v637 = vpop.f32.mrf.mxu0
        %v638 = vadd.f32 %v589, %v637
        %639 = vmatmul.bf16.gmra.mxu0 %v434
        %v640 = vpop.f32.mrf.mxu0
        %v641 = vadd.f32 %v592, %v640
        %v642 = vpop.f32.mrf.mxu0
        %v643 = vadd.f32 %v594, %v642
        %644 = vdwg.mxu0
        %v645 = vadd.f32 %v339, %v606
        %v646 = vadd.f32 %v340, %v608
        %v647 = vadd.f32 %v341, %v611
        %v648 = vadd.f32 %v342, %v613
        %v649 = vadd.f32 %v343, %v616
        %v650 = vadd.f32 %v344, %v618
        %v651 = vadd.f32 %v345, %v621
        %v652 = vadd.f32 %v346, %v623
        %v653 = vadd.f32 %v347, %v626
        %v654 = vadd.f32 %v348, %v628
        %v655 = vadd.f32 %v349, %v631
        %v656 = vadd.f32 %v350, %v633
        %v657 = vadd.f32 %v351, %v636
        %v658 = vadd.f32 %v352, %v638
        %v659 = vadd.f32 %v353, %v641
        %v660 = vadd.f32 %v354, %v643
        %661 = vst [vmem:[%s278] sm:$0xff] %v645
        %662 = vst [vmem:[%s278 + $0x8] sm:$0xff] %v646
        %663 = vst [vmem:[%s278 + $0x10] sm:$0xff] %v647
        %664 = vst [vmem:[%s278 + $0x18] sm:$0xff] %v648
        %665 = vst [vmem:[%s278 + $0x20] sm:$0xff] %v649
        %666 = vst [vmem:[%s278 + $0x28] sm:$0xff] %v650
        %667 = vst [vmem:[%s278 + $0x30] sm:$0xff] %v651
        %668 = vst [vmem:[%s278 + $0x38] sm:$0xff] %v652
        %669 = vst [vmem:[%s278 + $0x40] sm:$0xff] %v653
        %670 = vst [vmem:[%s278 + $0x48] sm:$0xff] %v654
        %671 = vst [vmem:[%s278 + $0x50] sm:$0xff] %v655
        %672 = vst [vmem:[%s278 + $0x58] sm:$0xff] %v656
        %673 = vst [vmem:[%s278 + $0x60] sm:$0xff] %v657
        %674 = vst [vmem:[%s278 + $0x68] sm:$0xff] %v658
        %675 = vst [vmem:[%s278 + $0x70] sm:$0xff] %v659
        %676 = vst [vmem:[%s278 + $0x78] sm:$0xff] %v660
        // Predicated region
        $region53: #{tpu_custom_call.1} parent=39 // pred_check
          %p677 = pneg %p282
        $region54: #{tpu_custom_call.1} parent=39 // pred_check_branch
          %679 = sbr.rel (%p677) target = $region56
        $region55: #{tpu_custom_call.1} parent=39 // pred_region
          %v680 = vld [vmem:[%s278] sm:$0xff]
          %v681 = vld [vmem:[%s278 + $0x8] sm:$0xff]
          %v682 = vld [vmem:[%s278 + $0x10] sm:$0xff]
          %v683 = vld [vmem:[%s278 + $0x18] sm:$0xff]
          %v684 = vld [vmem:[%s278 + $0x20] sm:$0xff]
          %v685 = vld [vmem:[%s278 + $0x28] sm:$0xff]
          %v686 = vld [vmem:[%s278 + $0x30] sm:$0xff]
          %v687 = vld [vmem:[%s278 + $0x38] sm:$0xff]
          %v688 = vld [vmem:[%s278 + $0x40] sm:$0xff]
          %v689 = vld [vmem:[%s278 + $0x48] sm:$0xff]
          %v690 = vld [vmem:[%s278 + $0x50] sm:$0xff]
          %v691 = vld [vmem:[%s278 + $0x58] sm:$0xff]
          %v692 = vld [vmem:[%s278 + $0x60] sm:$0xff]
          %v693 = vld [vmem:[%s278 + $0x68] sm:$0xff]
          %v694 = vld [vmem:[%s278 + $0x70] sm:$0xff]
          %v695 = vld [vmem:[%s278 + $0x78] sm:$0xff]
          %v696 = vld [vmem:[%s2] sm:$0x1]
          %v698 = vperm.slane %v696, 0
          %v700 = vadd.f32 %v680, %v698
          %v701 = vadd.f32 %v681, %v698
          %v702 = vadd.f32 %v682, %v698
          %v703 = vadd.f32 %v683, %v698
          %v704 = vadd.f32 %v684, %v698
          %v705 = vadd.f32 %v685, %v698
          %v706 = vadd.f32 %v686, %v698
          %v707 = vadd.f32 %v687, %v698
          %v708 = vadd.f32 %v688, %v698
          %v709 = vadd.f32 %v689, %v698
          %v710 = vadd.f32 %v690, %v698
          %v711 = vadd.f32 %v691, %v698
          %v712 = vadd.f32 %v692, %v698
          %v713 = vadd.f32 %v693, %v698
          %v714 = vadd.f32 %v694, %v698
          %v715 = vadd.f32 %v695, %v698
          %v716 = vlaneseq
          %v717 = vand.u32 %v716, 127
          %vm718 = vcmp.lt.s32.totalorder %v717, 32
          %v719 = vsel %vm718, %v700, 0.0
          %v720 = vsel %vm718, %v701, 0.0
          %v721 = vsel %vm718, %v702, 0.0
          %v722 = vsel %vm718, %v703, 0.0
          %v723 = vsel %vm718, %v704, 0.0
          %v724 = vsel %vm718, %v705, 0.0
          %v725 = vsel %vm718, %v706, 0.0
          %v726 = vsel %vm718, %v707, 0.0
          %v727 = vsel %vm718, %v708, 0.0
          %v728 = vsel %vm718, %v709, 0.0
          %v729 = vsel %vm718, %v710, 0.0
          %v730 = vsel %vm718, %v711, 0.0
          %v731 = vsel %vm718, %v712, 0.0
          %v732 = vsel %vm718, %v713, 0.0
          %v733 = vsel %vm718, %v714, 0.0
          %v734 = vsel %vm718, %v715, 0.0
          %735 = vadd.xlane.f32.xlu0 %v719
          %v736 = vpop.xlane.xlu0 %735
          %737 = vadd.xlane.f32.xlu0 %v720
          %v738 = vpop.xlane.xlu0 %737
          %739 = vadd.xlane.f32.xlu0 %v721
          %v740 = vpop.xlane.xlu0 %739
          %741 = vadd.xlane.f32.xlu0 %v722
          %v742 = vpop.xlane.xlu0 %741
          %743 = vadd.xlane.f32.xlu0 %v723
          %v744 = vpop.xlane.xlu0 %743
          %745 = vadd.xlane.f32.xlu0 %v724
          %v746 = vpop.xlane.xlu0 %745
          %747 = vadd.xlane.f32.xlu0 %v725
          %v748 = vpop.xlane.xlu0 %747
          %749 = vadd.xlane.f32.xlu0 %v726
          %v750 = vpop.xlane.xlu0 %749
          %751 = vadd.xlane.f32.xlu0 %v727
          %v752 = vpop.xlane.xlu0 %751
          %753 = vadd.xlane.f32.xlu0 %v728
          %v754 = vpop.xlane.xlu0 %753
          %755 = vadd.xlane.f32.xlu0 %v729
          %v756 = vpop.xlane.xlu0 %755
          %757 = vadd.xlane.f32.xlu0 %v730
          %v758 = vpop.xlane.xlu0 %757
          %759 = vadd.xlane.f32.xlu0 %v731
          %v760 = vpop.xlane.xlu0 %759
          %761 = vadd.xlane.f32.xlu0 %v732
          %v762 = vpop.xlane.xlu0 %761
          %763 = vadd.xlane.f32.xlu0 %v733
          %v764 = vpop.xlane.xlu0 %763
          %765 = vadd.xlane.f32.xlu0 %v734
          %v766 = vpop.xlane.xlu0 %765
          %v767 = vrcp.pop 32.0
          %v768 = vmul.f32 32.0, %v767
          %v769 = vsub.f32 1.0, %v768
          %v770 = vmul.f32 %v767, %v769
          %v771 = vadd.f32 %v767, %v770
          %vm772 = vweird.f32 %v767
          %v773 = vsel %vm772, %v767, %v771
          %v774 = vmul.f32 %v736, %v773
          %v775 = vmul.f32 %v738, %v773
          %v776 = vmul.f32 %v740, %v773
          %v777 = vmul.f32 %v742, %v773
          %v778 = vmul.f32 %v744, %v773
          %v779 = vmul.f32 %v746, %v773
          %v780 = vmul.f32 %v748, %v773
          %v781 = vmul.f32 %v750, %v773
          %v782 = vmul.f32 %v752, %v773
          %v783 = vmul.f32 %v754, %v773
          %v784 = vmul.f32 %v756, %v773
          %v785 = vmul.f32 %v758, %v773
          %v786 = vmul.f32 %v760, %v773
          %v787 = vmul.f32 %v762, %v773
          %v788 = vmul.f32 %v764, %v773
          %v789 = vmul.f32 %v766, %v773
          %v790 = vsub.f32 %v700, %v774
          %v791 = vsub.f32 %v701, %v775
          %v792 = vsub.f32 %v702, %v776
          %v793 = vsub.f32 %v703, %v777
          %v794 = vsub.f32 %v704, %v778
          %v795 = vsub.f32 %v705, %v779
          %v796 = vsub.f32 %v706, %v780
          %v797 = vsub.f32 %v707, %v781
          %v798 = vsub.f32 %v708, %v782
          %v799 = vsub.f32 %v709, %v783
          %v800 = vsub.f32 %v710, %v784
          %v801 = vsub.f32 %v711, %v785
          %v802 = vsub.f32 %v712, %v786
          %v803 = vsub.f32 %v713, %v787
          %v804 = vsub.f32 %v714, %v788
          %v805 = vsub.f32 %v715, %v789
          %v806 = vmul.f32 %v790, %v790
          %v807 = vmul.f32 %v791, %v791
          %v808 = vmul.f32 %v792, %v792
          %v809 = vmul.f32 %v793, %v793
          %v810 = vmul.f32 %v794, %v794
          %v811 = vmul.f32 %v795, %v795
          %v812 = vmul.f32 %v796, %v796
          %v813 = vmul.f32 %v797, %v797
          %v814 = vmul.f32 %v798, %v798
          %v815 = vmul.f32 %v799, %v799
          %v816 = vmul.f32 %v800, %v800
          %v817 = vmul.f32 %v801, %v801
          %v818 = vmul.f32 %v802, %v802
          %v819 = vmul.f32 %v803, %v803
          %v820 = vmul.f32 %v804, %v804
          %v821 = vmul.f32 %v805, %v805
          %v822 = vsel %vm718, %v806, 0.0
          %v823 = vsel %vm718, %v807, 0.0
          %v824 = vsel %vm718, %v808, 0.0
          %v825 = vsel %vm718, %v809, 0.0
          %v826 = vsel %vm718, %v810, 0.0
          %v827 = vsel %vm718, %v811, 0.0
          %v828 = vsel %vm718, %v812, 0.0
          %v829 = vsel %vm718, %v813, 0.0
          %v830 = vsel %vm718, %v814, 0.0
          %v831 = vsel %vm718, %v815, 0.0
          %v832 = vsel %vm718, %v816, 0.0
          %v833 = vsel %vm718, %v817, 0.0
          %v834 = vsel %vm718, %v818, 0.0
          %v835 = vsel %vm718, %v819, 0.0
          %v836 = vsel %vm718, %v820, 0.0
          %v837 = vsel %vm718, %v821, 0.0
          %838 = vadd.xlane.f32.xlu0 %v822
          %v839 = vpop.xlane.xlu0 %838
          %840 = vadd.xlane.f32.xlu0 %v823
          %v841 = vpop.xlane.xlu0 %840
          %842 = vadd.xlane.f32.xlu0 %v824
          %v843 = vpop.xlane.xlu0 %842
          %844 = vadd.xlane.f32.xlu0 %v825
          %v845 = vpop.xlane.xlu0 %844
          %846 = vadd.xlane.f32.xlu0 %v826
          %v847 = vpop.xlane.xlu0 %846
          %848 = vadd.xlane.f32.xlu0 %v827
          %v849 = vpop.xlane.xlu0 %848
          %850 = vadd.xlane.f32.xlu0 %v828
          %v851 = vpop.xlane.xlu0 %850
          %852 = vadd.xlane.f32.xlu0 %v829
          %v853 = vpop.xlane.xlu0 %852
          %854 = vadd.xlane.f32.xlu0 %v830
          %v855 = vpop.xlane.xlu0 %854
          %856 = vadd.xlane.f32.xlu0 %v831
          %v857 = vpop.xlane.xlu0 %856
          %858 = vadd.xlane.f32.xlu0 %v832
          %v859 = vpop.xlane.xlu0 %858
          %860 = vadd.xlane.f32.xlu0 %v833
          %v861 = vpop.xlane.xlu0 %860
          %862 = vadd.xlane.f32.xlu0 %v834
          %v863 = vpop.xlane.xlu0 %862
          %864 = vadd.xlane.f32.xlu0 %v835
          %v865 = vpop.xlane.xlu0 %864
          %866 = vadd.xlane.f32.xlu0 %v836
          %v867 = vpop.xlane.xlu0 %866
          %868 = vadd.xlane.f32.xlu0 %v837
          %v869 = vpop.xlane.xlu0 %868
          %v870 = vmul.f32 %v839, %v773
          %v871 = vmul.f32 %v841, %v773
          %v872 = vmul.f32 %v843, %v773
          %v873 = vmul.f32 %v845, %v773
          %v874 = vmul.f32 %v847, %v773
          %v875 = vmul.f32 %v849, %v773
          %v876 = vmul.f32 %v851, %v773
          %v877 = vmul.f32 %v853, %v773
          %v878 = vmul.f32 %v855, %v773
          %v879 = vmul.f32 %v857, %v773
          %v880 = vmul.f32 %v859, %v773
          %v881 = vmul.f32 %v861, %v773
          %v882 = vmul.f32 %v863, %v773
          %v883 = vmul.f32 %v865, %v773
          %v884 = vmul.f32 %v867, %v773
          %v885 = vmul.f32 %v869, %v773
          %v886 = vadd.f32 %v870, 1e-05
          %v887 = vadd.f32 %v871, 1e-05
          %v888 = vadd.f32 %v872, 1e-05
          %v889 = vadd.f32 %v873, 1e-05
          %v890 = vadd.f32 %v874, 1e-05
          %v891 = vadd.f32 %v875, 1e-05
          %v892 = vadd.f32 %v876, 1e-05
          %v893 = vadd.f32 %v877, 1e-05
          %v894 = vadd.f32 %v878, 1e-05
          %v895 = vadd.f32 %v879, 1e-05
          %v896 = vadd.f32 %v880, 1e-05
          %v897 = vadd.f32 %v881, 1e-05
          %v898 = vadd.f32 %v882, 1e-05
          %v899 = vadd.f32 %v883, 1e-05
          %v900 = vadd.f32 %v884, 1e-05
          %v901 = vadd.f32 %v885, 1e-05
          %v902 = vrsqrt.pop %v886
          %v903 = vmul.f32 %v902, %v886
          %v904 = vmul.f32 %v903, %v902
          %v905 = vmul.f32 0.5, %v904
          %v906 = vsub.f32 1.5, %v905
          %v907 = vmul.f32 %v902, %v906
          %vm908 = vweird.f32 %v886
          %vm909 = vweird.f32 %v902
          %vm910 = vmor %vm908, %vm909
          %v911 = vsel %vm910, %v902, %v907
          %v912 = vrsqrt.pop %v887
          %v913 = vmul.f32 %v912, %v887
          %v914 = vmul.f32 %v913, %v912
          %v915 = vmul.f32 0.5, %v914
          %v916 = vsub.f32 1.5, %v915
          %v917 = vmul.f32 %v912, %v916
          %vm918 = vweird.f32 %v887
          %vm919 = vweird.f32 %v912
          %vm920 = vmor %vm918, %vm919
          %v921 = vsel %vm920, %v912, %v917
          %v922 = vrsqrt.pop %v888
          %v923 = vmul.f32 %v922, %v888
          %v924 = vmul.f32 %v923, %v922
          %v925 = vmul.f32 0.5, %v924
          %v926 = vsub.f32 1.5, %v925
          %v927 = vmul.f32 %v922, %v926
          %vm928 = vweird.f32 %v888
          %vm929 = vweird.f32 %v922
          %vm930 = vmor %vm928, %vm929
          %v931 = vsel %vm930, %v922, %v927
          %v932 = vrsqrt.pop %v889
          %v933 = vmul.f32 %v932, %v889
          %v934 = vmul.f32 %v933, %v932
          %v935 = vmul.f32 0.5, %v934
          %v936 = vsub.f32 1.5, %v935
          %v937 = vmul.f32 %v932, %v936
          %vm938 = vweird.f32 %v889
          %vm939 = vweird.f32 %v932
          %vm940 = vmor %vm938, %vm939
          %v941 = vsel %vm940, %v932, %v937
          %v942 = vrsqrt.pop %v890
          %v943 = vmul.f32 %v942, %v890
          %v944 = vmul.f32 %v943, %v942
          %v945 = vmul.f32 0.5, %v944
          %v946 = vsub.f32 1.5, %v945
          %v947 = vmul.f32 %v942, %v946
          %vm948 = vweird.f32 %v890
          %vm949 = vweird.f32 %v942
          %vm950 = vmor %vm948, %vm949
          %v951 = vsel %vm950, %v942, %v947
          %v952 = vrsqrt.pop %v891
          %v953 = vmul.f32 %v952, %v891
          %v954 = vmul.f32 %v953, %v952
          %v955 = vmul.f32 0.5, %v954
          %v956 = vsub.f32 1.5, %v955
          %v957 = vmul.f32 %v952, %v956
          %vm958 = vweird.f32 %v891
          %vm959 = vweird.f32 %v952
          %vm960 = vmor %vm958, %vm959
          %v961 = vsel %vm960, %v952, %v957
          %v962 = vrsqrt.pop %v892
          %v963 = vmul.f32 %v962, %v892
          %v964 = vmul.f32 %v963, %v962
          %v965 = vmul.f32 0.5, %v964
          %v966 = vsub.f32 1.5, %v965
          %v967 = vmul.f32 %v962, %v966
          %vm968 = vweird.f32 %v892
          %vm969 = vweird.f32 %v962
          %vm970 = vmor %vm968, %vm969
          %v971 = vsel %vm970, %v962, %v967
          %v972 = vrsqrt.pop %v893
          %v973 = vmul.f32 %v972, %v893
          %v974 = vmul.f32 %v973, %v972
          %v975 = vmul.f32 0.5, %v974
          %v976 = vsub.f32 1.5, %v975
          %v977 = vmul.f32 %v972, %v976
          %vm978 = vweird.f32 %v893
          %vm979 = vweird.f32 %v972
          %vm980 = vmor %vm978, %vm979
          %v981 = vsel %vm980, %v972, %v977
          %v982 = vrsqrt.pop %v894
          %v983 = vmul.f32 %v982, %v894
          %v984 = vmul.f32 %v983, %v982
          %v985 = vmul.f32 0.5, %v984
          %v986 = vsub.f32 1.5, %v985
          %v987 = vmul.f32 %v982, %v986
          %vm988 = vweird.f32 %v894
          %vm989 = vweird.f32 %v982
          %vm990 = vmor %vm988, %vm989
          %v991 = vsel %vm990, %v982, %v987
          %v992 = vrsqrt.pop %v895
          %v993 = vmul.f32 %v992, %v895
          %v994 = vmul.f32 %v993, %v992
          %v995 = vmul.f32 0.5, %v994
          %v996 = vsub.f32 1.5, %v995
          %v997 = vmul.f32 %v992, %v996
          %vm998 = vweird.f32 %v895
          %vm999 = vweird.f32 %v992
          %vm1000 = vmor %vm998, %vm999
          %v1001 = vsel %vm1000, %v992, %v997
          %v1002 = vrsqrt.pop %v896
          %v1003 = vmul.f32 %v1002, %v896
          %v1004 = vmul.f32 %v1003, %v1002
          %v1005 = vmul.f32 0.5, %v1004
          %v1006 = vsub.f32 1.5, %v1005
          %v1007 = vmul.f32 %v1002, %v1006
          %vm1008 = vweird.f32 %v896
          %vm1009 = vweird.f32 %v1002
          %vm1010 = vmor %vm1008, %vm1009
          %v1011 = vsel %vm1010, %v1002, %v1007
          %v1012 = vrsqrt.pop %v897
          %v1013 = vmul.f32 %v1012, %v897
          %v1014 = vmul.f32 %v1013, %v1012
          %v1015 = vmul.f32 0.5, %v1014
          %v1016 = vsub.f32 1.5, %v1015
          %v1017 = vmul.f32 %v1012, %v1016
          %vm1018 = vweird.f32 %v897
          %vm1019 = vweird.f32 %v1012
          %vm1020 = vmor %vm1018, %vm1019
          %v1021 = vsel %vm1020, %v1012, %v1017
          %v1022 = vrsqrt.pop %v898
          %v1023 = vmul.f32 %v1022, %v898
          %v1024 = vmul.f32 %v1023, %v1022
          %v1025 = vmul.f32 0.5, %v1024
          %v1026 = vsub.f32 1.5, %v1025
          %v1027 = vmul.f32 %v1022, %v1026
          %vm1028 = vweird.f32 %v898
          %vm1029 = vweird.f32 %v1022
          %vm1030 = vmor %vm1028, %vm1029
          %v1031 = vsel %vm1030, %v1022, %v1027
          %v1032 = vrsqrt.pop %v899
          %v1033 = vmul.f32 %v1032, %v899
          %v1034 = vmul.f32 %v1033, %v1032
          %v1035 = vmul.f32 0.5, %v1034
          %v1036 = vsub.f32 1.5, %v1035
          %v1037 = vmul.f32 %v1032, %v1036
          %vm1038 = vweird.f32 %v899
          %vm1039 = vweird.f32 %v1032
          %vm1040 = vmor %vm1038, %vm1039
          %v1041 = vsel %vm1040, %v1032, %v1037
          %v1042 = vrsqrt.pop %v900
          %v1043 = vmul.f32 %v1042, %v900
          %v1044 = vmul.f32 %v1043, %v1042
          %v1045 = vmul.f32 0.5, %v1044
          %v1046 = vsub.f32 1.5, %v1045
          %v1047 = vmul.f32 %v1042, %v1046
          %vm1048 = vweird.f32 %v900
          %vm1049 = vweird.f32 %v1042
          %vm1050 = vmor %vm1048, %vm1049
          %v1051 = vsel %vm1050, %v1042, %v1047
          %v1052 = vrsqrt.pop %v901
          %v1053 = vmul.f32 %v1052, %v901
          %v1054 = vmul.f32 %v1053, %v1052
          %v1055 = vmul.f32 0.5, %v1054
          %v1056 = vsub.f32 1.5, %v1055
          %v1057 = vmul.f32 %v1052, %v1056
          %vm1058 = vweird.f32 %v901
          %vm1059 = vweird.f32 %v1052
          %vm1060 = vmor %vm1058, %vm1059
          %v1061 = vsel %vm1060, %v1052, %v1057
          %v1062 = vmul.f32 %v790, %v911
          %v1063 = vmul.f32 %v791, %v921
          %v1064 = vmul.f32 %v792, %v931
          %v1065 = vmul.f32 %v793, %v941
          %v1066 = vmul.f32 %v794, %v951
          %v1067 = vmul.f32 %v795, %v961
          %v1068 = vmul.f32 %v796, %v971
          %v1069 = vmul.f32 %v797, %v981
          %v1070 = vmul.f32 %v798, %v991
          %v1071 = vmul.f32 %v799, %v1001
          %v1072 = vmul.f32 %v800, %v1011
          %v1073 = vmul.f32 %v801, %v1021
          %v1074 = vmul.f32 %v802, %v1031
          %v1075 = vmul.f32 %v803, %v1041
          %v1076 = vmul.f32 %v804, %v1051
          %v1077 = vmul.f32 %v805, %v1061
          %v1078 = vld [vmem:[%s3] sm:$0x1]
          %v1080 = vperm.slane %v1078, 0
          %v1082 = vmul.f32 %v1062, %v1080
          %v1083 = vmul.f32 %v1063, %v1080
          %v1084 = vmul.f32 %v1064, %v1080
          %v1085 = vmul.f32 %v1065, %v1080
          %v1086 = vmul.f32 %v1066, %v1080
          %v1087 = vmul.f32 %v1067, %v1080
          %v1088 = vmul.f32 %v1068, %v1080
          %v1089 = vmul.f32 %v1069, %v1080
          %v1090 = vmul.f32 %v1070, %v1080
          %v1091 = vmul.f32 %v1071, %v1080
          %v1092 = vmul.f32 %v1072, %v1080
          %v1093 = vmul.f32 %v1073, %v1080
          %v1094 = vmul.f32 %v1074, %v1080
          %v1095 = vmul.f32 %v1075, %v1080
          %v1096 = vmul.f32 %v1076, %v1080
          %v1097 = vmul.f32 %v1077, %v1080
          %v1098 = vld [vmem:[%s4] sm:$0x1]
          %v1100 = vperm.slane %v1098, 0
          %v1102 = vadd.f32 %v1082, %v1100
          %v1103 = vadd.f32 %v1083, %v1100
          %v1104 = vadd.f32 %v1084, %v1100
          %v1105 = vadd.f32 %v1085, %v1100
          %v1106 = vadd.f32 %v1086, %v1100
          %v1107 = vadd.f32 %v1087, %v1100
          %v1108 = vadd.f32 %v1088, %v1100
          %v1109 = vadd.f32 %v1089, %v1100
          %v1110 = vadd.f32 %v1090, %v1100
          %v1111 = vadd.f32 %v1091, %v1100
          %v1112 = vadd.f32 %v1092, %v1100
          %v1113 = vadd.f32 %v1093, %v1100
          %v1114 = vadd.f32 %v1094, %v1100
          %v1115 = vadd.f32 %v1095, %v1100
          %v1116 = vadd.f32 %v1096, %v1100
          %v1117 = vadd.f32 %v1097, %v1100
          %1118 = vst [vmem:[%s278] sm:$0xff] %v1102
          %1119 = vst [vmem:[%s278 + $0x8] sm:$0xff] %v1103
          %1120 = vst [vmem:[%s278 + $0x10] sm:$0xff] %v1104
          %1121 = vst [vmem:[%s278 + $0x18] sm:$0xff] %v1105
          %1122 = vst [vmem:[%s278 + $0x20] sm:$0xff] %v1106
          %1123 = vst [vmem:[%s278 + $0x28] sm:$0xff] %v1107
          %1124 = vst [vmem:[%s278 + $0x30] sm:$0xff] %v1108
          %1125 = vst [vmem:[%s278 + $0x38] sm:$0xff] %v1109
          %1126 = vst [vmem:[%s278 + $0x40] sm:$0xff] %v1110
          %1127 = vst [vmem:[%s278 + $0x48] sm:$0xff] %v1111
          %1128 = vst [vmem:[%s278 + $0x50] sm:$0xff] %v1112
          %1129 = vst [vmem:[%s278 + $0x58] sm:$0xff] %v1113
          %1130 = vst [vmem:[%s278 + $0x60] sm:$0xff] %v1114
          %1131 = vst [vmem:[%s278 + $0x68] sm:$0xff] %v1115
          %1132 = vst [vmem:[%s278 + $0x70] sm:$0xff] %v1116
          %1133 = vst [vmem:[%s278 + $0x78] sm:$0xff] %v1117
        $region56: #{tpu_custom_call.1} parent=39 // pred_fallthru
          _
        %s1134 = sand.u32 %s155, 1
        %s1135 = scalar_lea.sflag [#allocation4], %s1134
        %s1136 = sand.u32 %s155, 1
        %s1137 = smul.addr %s1136, 128
        %s1138 = scalar_lea.vmem [#allocation7], %s1137
        // Predicated region
        $region57: #{tpu_custom_call.1} parent=39 // pred_check
          %p1139 = pneg %p165
        $region58: #{tpu_custom_call.1} parent=39 // pred_check_branch
          %1141 = sbr.rel (%p1139) target = $region60
        $region59: #{tpu_custom_call.1} parent=39 // pred_region
          %s1142 = smul.u32 16, %s27
          %1144 = vsyncadd %s1135, 0
          %s1145 = smul.addr %s1142, 8
          %s1146 = scalar_lea.hbm %s5, %s1145
          %s1147 = sshll.u32 %s1138, 4
          %s1148 = int_to_ptr.vmem [resolvable:$true] %s1147
          %s1149 = sshll.u32 %s1146, 4
          %s1150 = int_to_ptr.hbm [resolvable:$true] %s1149
          %1155 = dma.vmem_to_hbm [thread:$0]  %s1148, 2048, %s1150, %s1135, 128, 128, 8
        $region60: #{tpu_custom_call.1} parent=39 // pred_fallthru
          _
      $region40: #{tpu_custom_call.1} parent=5 // pred_fallthru
        _
      %p1156 = scmp.le.s32.totalorder 2, %s18
      // Predicated region
      $region61: #{tpu_custom_call.1} parent=5 // pred_check
        %p1157 = pneg %p1156
      $region62: #{tpu_custom_call.1} parent=5 // pred_check_branch
        %1159 = sbr.rel (%p1157) target = $region64
      $region63: #{tpu_custom_call.1} parent=5 // pred_region
        %s1160 = ssub.s32 %s18, 2
        // Predicated region
        $region65: #{tpu_custom_call.1} parent=63 // pred_check
          %p1161 = pneg %p171
        $region66: #{tpu_custom_call.1} parent=63 // pred_check_branch
          %1163 = sbr.rel (%p1161) target = $region68
        $region67: #{tpu_custom_call.1} parent=63 // pred_region
          %s1164 = sand.u32 %s156, 1
          %s1165 = scalar_lea.sflag [#allocation4], %s1164
          %s1166 = sand.u32 %s156, 1
          %s1167 = smul.addr %s1166, 128
          %s1168 = scalar_lea.vmem [#allocation7], %s1167
          %1170 = dma.done %s1165, 2048
        $region68: #{tpu_custom_call.1} parent=63 // pred_fallthru
          _
      $region64: #{tpu_custom_call.1} parent=5 // pred_fallthru
        _
    $region6: #{tpu_custom_call.1} parent=1 // loop_footer
      %s22 = sadd.s32 1, %s18
    $region7: #{tpu_custom_call.1} parent=1 // loop_footer_branch
      %17 = sbr.rel target = $region3
    $region8: #{tpu_custom_call.1} parent=1 // loop_exit
      _
    %1171 = vsyncpa [#allocation3], 1
    %s1172 = scalar_lea.sflag [#allocation3], 1
    %1173 = vsyncpa %s1172, 1
    %1174 = vsyncpa [#allocation6], 1
    %1175 = vsyncpa [#allocation4], 1
    %s1176 = scalar_lea.sflag [#allocation4], 1
    %1177 = vsyncpa %s1176, 1

</llo_original>
